<compile_context>
chip_gen: v7x
topology: tpu7x:2x2x1
jax: 0.10.0
libtpu: 0.0.40
codegen_flags: <defaults>
</compile_context>

<pallas_src>
import functools
import math

import jax
import jax.numpy as jnp
import numpy as np
from jax.experimental import pallas as pl
from jax.experimental.pallas import tpu as pltpu


def node_kernel(x_ref, w_ref, b_ref, o_ref, *, ni, d):
    """One grid step = one row tile.

    x_ref: (tm, ni*D) bf16    concatenated inputs (torch.cat(inputs, -1))
    w_ref: (ni*D, ni*D) bf16  block-diagonal, softmax-folded W_g^T  (resident)
    b_ref: (1, ni*D)   f32    softmax-folded bias                   (resident)
    o_ref: (tm, D)            output tile
    """
    # Single MXU pass covers all ni groups (off-diagonal zero blocks ride
    # inside the same native MXU tile for free).
    y = jnp.dot(x_ref[...], w_ref[...], preferred_element_type=jnp.float32)
    y = jnp.maximum(y + b_ref[...], 0.0)           # bias + ReLU, lane-dense slab
    # Weighted group mixture == sum of the ni D-wide lane blocks (the strictly
    # positive softmax weights are already folded into W / bias, and positive
    # scales commute with ReLU).
    acc = y[:, 0:d]
    for g in range(1, ni):                          # ni is static -> unrolled
        acc = acc + y[:, g * d:(g + 1) * d]
    # TODO(synk): output last dim is isize (<128 lanes) -> lane-sparse stores;
    # a lane-dense (tm*D/128, 128) repack would need the caller to accept a
    # reshaped output layout (mainly a v5e store-slot win).
    o_ref[...] = acc.astype(o_ref.dtype)


_SUBLANE = 16  # bf16 sublane packing


def _choose_tiling(M, ni, D, out_itemsize):
    """Pick (row_tile, padded_rows).

    * row_tile is a multiple of 16 (bf16 sublanes); M need NOT divide it --
      the wrapper zero-pads the row tail instead of shrinking the tile.
    * aims for >= 2 grid steps so the single "parallel" axis can shard across
      v7x's two TensorCores.
    * capped by a conservative live-VMEM budget that fits every generation's
      scoped default (v5e 16 MiB, v6e/v7x 32 MiB).
    """
    lanes_in = pl.cdiv(ni * D, 128) * 128           # lane padding of x slab
    lanes_out = pl.cdiv(D, 128) * 128               # lane padding of output
    per_row = (2 * 2 * lanes_in                     # double-buffered bf16 x
               + 2 * out_itemsize * lanes_out       # double-buffered output
               + 4 * lanes_in)                      # f32 pre-activation slab
    budget = 12 << 20
    tm_cap = max(_SUBLANE,
                 min(4096, (budget // per_row) // _SUBLANE * _SUBLANE))
    half = pl.cdiv(pl.cdiv(M, 2), _SUBLANE) * _SUBLANE   # >= 2 steps if possible
    tm = max(_SUBLANE, min(tm_cap, half))
    padded = pl.cdiv(M, tm) * tm
    return tm, padded


@jax.jit
def node_forward(inputs, W, bias, node_weight):
    """inputs: list of ni arrays (*lead, D); W: (ni, D, D) in [out, in] layout;
    bias: (ni*D,); node_weight: (ni,).  Returns (*lead, D) in inputs' dtype."""
    ni = len(inputs)
    lead = inputs[0].shape[:-1]
    D = inputs[0].shape[-1]
    M = int(math.prod(lead))
    out_dtype = inputs[0].dtype

    # torch.cat(inputs, -1), carried through HBM as bf16 (memory-bound kernel;
    # ideally the caller already supplies bf16 activations so the cast fuses).
    x = jnp.concatenate(
        [t.astype(jnp.bfloat16).reshape(M, D) for t in inputs], axis=-1)

    # Fold the (strictly positive) softmax mixing weights into W^T / bias in
    # f32, build the block-diagonal packed weight, cast once to bf16.
    wsm = jax.nn.softmax(node_weight.astype(jnp.float32), axis=-1)     # (ni,)
    w_t = jnp.transpose(W, (0, 2, 1)).astype(jnp.float32) * wsm[:, None, None]
    w_bd = jnp.zeros((ni * D, ni * D), jnp.float32)
    for g in range(ni):
        w_bd = w_bd.at[g * D:(g + 1) * D, g * D:(g + 1) * D].set(w_t[g])
    w_bd = w_bd.astype(jnp.bfloat16)
    b_bd = (bias.reshape(ni, D).astype(jnp.float32)
            * wsm[:, None]).reshape(1, ni * D)

    tm, padded_M = _choose_tiling(M, ni, D, out_dtype.itemsize)
    if padded_M != M:
        # Row-tail pad only when M is awkward; padded rows never contaminate
        # real rows (row-independent math) and are sliced off below.
        x = jnp.pad(x, ((0, padded_M - M), (0, 0)))

    out = pl.pallas_call(
        functools.partial(node_kernel, ni=ni, d=D),
        out_shape=jax.ShapeDtypeStruct((padded_M, D), out_dtype),
        grid=(padded_M // tm,),
        in_specs=[
            pl.BlockSpec((tm, ni * D), lambda i: (i, 0)),      # per-tile x slab
            pl.BlockSpec((ni * D, ni * D), lambda i: (0, 0)),  # resident weight
            pl.BlockSpec((1, ni * D), lambda i: (0, 0)),       # resident bias
        ],
        out_specs=pl.BlockSpec((tm, D), lambda i: (i, 0)),
        compiler_params=pltpu.CompilerParams(
            dimension_semantics=("parallel",),   # megacore-friendly M axis
            vmem_limit_bytes=32 * 1024 * 1024),
    )(x, w_bd, b_bd)

    return out[:M].reshape(lead + (D,))


def node_forward_ref(inputs, W, bias, node_weight):
    """Plain-JAX f32 reference mirroring the PyTorch training path."""
    ni = len(inputs)
    D = inputs[0].shape[-1]
    wsm = jax.nn.softmax(node_weight, axis=-1)
    out = jnp.zeros(inputs[0].shape, jnp.float32)
    for g in range(ni):
        y = inputs[g] @ W[g].T + bias[g * D:(g + 1) * D]
        out = out + wsm[g] * jnp.maximum(y, 0.0)
    return out


if __name__ == "__main__":
    # Module config: Node(num_input=2, isize=32), dropout=0.0 -> no dropout.
    ni = 2       # num_input
    isize = 32
    B, L = 2, 8  # leading dims of each input tensor

    key = jax.random.PRNGKey(0)
    k_w, k_b, k_x0, k_x1 = jax.random.split(key, 4)

    # GroupLinear params: per-group weight (ni, isize, isize) in [out, in]
    # layout (nnFunc.linear convention) and bias of length ni*isize.
    W = 0.1 * jax.random.normal(k_w, (ni, isize, isize), dtype=jnp.float32)
    bias = 0.1 * jax.random.normal(k_b, (ni * isize,), dtype=jnp.float32)
    # Node mixing weight initialized to zeros (as in __init__ / fix_init)
    # -> softmax gives a uniform 1/ni mixture.
    node_weight = jnp.zeros((ni,), dtype=jnp.float32)

    # bf16 activations (HBM-bound kernel; bf16 is the intended data path).
    inputs = [
        jax.random.normal(k_x0, (B, L, isize), jnp.float32).astype(jnp.bfloat16),
        jax.random.normal(k_x1, (B, L, isize), jnp.float32).astype(jnp.bfloat16),
    ]

    out = node_forward(inputs, W, bias, node_weight)
    out = jax.block_until_ready(out)

    # Reference in f32 on the same (bf16-rounded) input values.
    ref = node_forward_ref([t.astype(jnp.float32) for t in inputs],
                           W, bias, node_weight)
    assert out.shape == (B, L, isize)
    assert out.dtype == jnp.bfloat16
    np.testing.assert_allclose(np.asarray(out).astype(np.float32),
                               np.asarray(ref), rtol=2e-2, atol=2e-2)

    # TODO(synk): eval path (self.select() hard argmax routing) and inplace
    # Dropout are not exercised here (training path, dropout=0.0).
    print("KERNEL_OK")
</pallas_src>

<mosaic_0001>
module attributes {stable_mosaic.version = 11 : i64} {
  func.func @node_kernel(%arg0: i32, %arg1: memref<16x64xbf16, #tpu.memory_space<vmem>>, %arg2: memref<64x64xbf16, #tpu.memory_space<vmem>>, %arg3: memref<1x64xf32, #tpu.memory_space<vmem>>, %arg4: memref<16x32xbf16, #tpu.memory_space<vmem>>) attributes {dimension_semantics = [#tpu.dimension_semantics<parallel>], iteration_bounds = array<i64: 1>, scalar_prefetch = 0 : i64, scratch_operands = 0 : i64, tpu.core_type = #tpu.core_type<tc>, window_params = [{transform_indices = @transform_0, window_bounds = array<i64: 16, 64>}, {pipeline_mode = #tpu.pipeline_mode<synchronous>, transform_indices = @transform_1, window_bounds = array<i64: 64, 64>}, {pipeline_mode = #tpu.pipeline_mode<synchronous>, transform_indices = @transform_2, window_bounds = array<i64: 1, 64>}, {transform_indices = @transform_3, window_bounds = array<i64: 16, 32>}]} {
    %c0 = arith.constant 0 : index
    %c0_0 = arith.constant 0 : index
    %0 = vector.load %arg1[%c0, %c0_0] : memref<16x64xbf16, #tpu.memory_space<vmem>>, vector<16x64xbf16>
    %c0_1 = arith.constant 0 : index
    %c0_2 = arith.constant 0 : index
    %1 = vector.load %arg2[%c0_1, %c0_2] : memref<64x64xbf16, #tpu.memory_space<vmem>>, vector<64x64xbf16>
    %cst = arith.constant dense<0.000000e+00> : vector<16x64xf32>
    %2 = tpu.matmul %0, %1, %cst {dimension_numbers = #tpu.dot_dimension_numbers<[1], [0], [0], [1], [0, 0, 1, 1], [], []>} : vector<16x64xbf16>, vector<64x64xbf16>, vector<16x64xf32> -> vector<16x64xf32>
    %c0_3 = arith.constant 0 : index
    %c0_4 = arith.constant 0 : index
    %3 = vector.load %arg3[%c0_3, %c0_4] : memref<1x64xf32, #tpu.memory_space<vmem>>, vector<1x64xf32>
    %4 = vector.broadcast %3 : vector<1x64xf32> to vector<16x64xf32>
    %5 = arith.addf %2, %4 : vector<16x64xf32>
    %cst_5 = arith.constant 0.000000e+00 : f32
    %6 = vector.broadcast %cst_5 : f32 to vector<16x64xf32>
    %7 = arith.maximumf %5, %6 : vector<16x64xf32>
    %8 = vector.extract_strided_slice %7 {offsets = [0, 0], sizes = [16, 32], strides = [1, 1]} : vector<16x64xf32> to vector<16x32xf32>
    %9 = vector.extract_strided_slice %7 {offsets = [0, 32], sizes = [16, 32], strides = [1, 1]} : vector<16x64xf32> to vector<16x32xf32>
    %10 = arith.addf %8, %9 : vector<16x32xf32>
    %11 = arith.truncf %10 : vector<16x32xf32> to vector<16x32xbf16>
    %c0_6 = arith.constant 0 : index
    %c0_7 = arith.constant 0 : index
    %12 = vector.load %arg4[%c0_6, %c0_7] : memref<16x32xbf16, #tpu.memory_space<vmem>>, vector<16x32xbf16>
    tpu.vector_store %arg4[%c0_6, %c0_7], %11 {strides = array<i32>} : memref<16x32xbf16, #tpu.memory_space<vmem>>, vector<16x32xbf16>,
    return
  }
  func.func @transform_0(%arg0: i32) -> (i32, i32) {
    %c0_i32 = arith.constant 0 : i32
    %c0_i32_0 = arith.constant 0 : i32
    return %arg0, %c0_i32 : i32, i32
  }
  func.func @transform_1(%arg0: i32) -> (i32, i32) {
    %c0_i32 = arith.constant 0 : i32
    %c0_i32_0 = arith.constant 0 : i32
    %c0_i32_1 = arith.constant 0 : i32
    return %c0_i32, %c0_i32_0 : i32, i32
  }
  func.func @transform_2(%arg0: i32) -> (i32, i32) {
    %c0_i32 = arith.constant 0 : i32
    %c0_i32_0 = arith.constant 0 : i32
    %c0_i32_1 = arith.constant 0 : i32
    return %c0_i32, %c0_i32_0 : i32, i32
  }
  func.func @transform_3(%arg0: i32) -> (i32, i32) {
    %c0_i32 = arith.constant 0 : i32
    %c0_i32_0 = arith.constant 0 : i32
    return %arg0, %c0_i32 : i32, i32
  }
}

</mosaic_0001>

<llo_original>
// kernel: node_forward.1
$region0: #{node_forward.1}
  #allocation0 [shape = 'u32[]', space=smem, size = 0x4, offset = 0x4, fixed_abs, tag = 'smem constant byte address 0x4 - core index']
  #allocation1 [shape = 'u32[144,128]{1,0:T(1,128)}', space=vmem, size = 0x12000, scoped, tag = 'internal scratch']
  %s0 = inlined_call_operand.vmem [shape: bf16[16,64], index: 0, kind: input, shape index: {}]
  %s1 = inlined_call_operand.vmem [shape: bf16[64,64], index: 1, kind: input, shape index: {}]
  %s2 = inlined_call_operand.vmem [shape: f32[1,64], index: 2, kind: input, shape index: {}]
  %s3 = inlined_call_operand.hbm [shape: bf16[16,32], index: 3, kind: output, shape index: {}]
  %s4 = sld [smem:[#allocation0]]
  $region22: #{node_forward.1} parent=0
    _
  %s6 = ssub.s32 1, %s4
  %s7 = scalar_select 0, %s6, %s4
  $region1: #{node_forward.1} parent=0
    #allocation2 [shape = 'u8[4096]{0}', space=vmem, size = 0x1000, scoped, tag = 'output window, operand 0, single buffered']
    #allocation3 [shape = 's32[1]{0}', space=sflag, size = 0x4, scoped, tag = 'scoped memory for node_forward.1']
    %8 = vsyncpa [#allocation3], 0
    // Predicated region
    $region2: #{node_forward.1} parent=1 // pred_check
      _
    $region3: #{node_forward.1} parent=1 // pred_check_branch
      %10 = sbr.rel (0) target = $region5
    $region4: #{node_forward.1} parent=1 // pred_region
      _
    $region5: #{node_forward.1} parent=1 // pred_fallthru
      _
    // Predicated region
    $region6: #{node_forward.1} parent=1 // pred_check
      _
    $region7: #{node_forward.1} parent=1 // pred_check_branch
      %12 = sbr.rel (0) target = $region9
    $region8: #{node_forward.1} parent=1 // pred_region
      _
    $region9: #{node_forward.1} parent=1 // pred_fallthru
      _
    // Predicated region
    $region10: #{node_forward.1} parent=1 // pred_check
      _
    $region11: #{node_forward.1} parent=1 // pred_check_branch
      %14 = sbr.rel (0) target = $region13
    $region12: #{node_forward.1} parent=1 // pred_region
      _
    $region13: #{node_forward.1} parent=1 // pred_fallthru
      _
    %v16 = vld [vmem:[%s0] sm:$0xf]
    %v17 = vld [vmem:[%s0 + $0x4] sm:$0xf]
    %v18 = vld [vmem:[%s1] sm:$0xf]
    %v19 = vld [vmem:[%s1 + $0x4] sm:$0xf]
    %v20 = vld [vmem:[%s1 + $0x8] sm:$0xf]
    %v21 = vld [vmem:[%s1 + $0xc] sm:$0xf]
    %v22 = vld [vmem:[%s1 + $0x10] sm:$0xf]
    %v23 = vld [vmem:[%s1 + $0x14] sm:$0xf]
    %v24 = vld [vmem:[%s1 + $0x18] sm:$0xf]
    %v25 = vld [vmem:[%s1 + $0x1c] sm:$0xf]
    %v26 = vld [vmem:[%s2] sm:$0x1]
    %v28 = vlaneseq
    %v29 = vshrl.u32 %v28, 7
    %v30 = vsub.s32 0, %v29
    %v31 = vrot.slane %v26, %v30
    %v35 = vunpack.c.l.b16 %v16
    %v36 = vunpack.c.l.b16 %v17
    %v37 = vpack.c.b16 %v36, %v35
    %v46 = vunpack.c.l.b16 %v18
    %v47 = vunpack.c.l.b16 %v19
    %v48 = vunpack.c.l.b16 %v20
    %v49 = vunpack.c.l.b16 %v21
    %v50 = vunpack.c.l.b16 %v22
    %v51 = vunpack.c.l.b16 %v23
    %v52 = vunpack.c.l.b16 %v24
    %v53 = vunpack.c.l.b16 %v25
    %v54 = vpack.c.b16 %v47, %v46
    %v55 = vpack.c.b16 %v49, %v48
    %v56 = vpack.c.b16 %v51, %v50
    %v57 = vpack.c.b16 %v53, %v52
    %vm62 = vcmask 523264
    %v64 = vsel %vm62, %v37, 0
    %66 = vmatprep.subr.bf16.mxu0 0
    %67 = vmatpush1.bf16.msra.mxu0 %v54
    %68 = vmatprep.subr.bf16.mxu0 0
    %69 = vmatpush1.bf16.msra.mxu0 %v55
    %70 = vmatprep.subr.bf16.mxu0 0
    %71 = vmatpush1.bf16.msra.mxu0 %v56
    %72 = vmatprep.subr.bf16.mxu0 0
    %73 = vmatpush1.bf16.msra.mxu0 %v57
    %74 = vmatprep.subr.bf16.mxu0 0
    %75 = vmatpush1.bf16.msra.mxu0 0
    %76 = vmatprep.subr.bf16.mxu0 0
    %77 = vmatpush1.bf16.msra.mxu0 0
    %78 = vmatprep.subr.bf16.mxu0 0
    %79 = vmatpush1.bf16.msra.mxu0 0
    %80 = vmatprep.subr.bf16.mxu0 0
    %81 = vmatpush1.bf16.msra.mxu0 0
    %82 = vmatprep.subr.bf16.mxu0 0
    %83 = vmatpush1.bf16.msra.mxu0 0
    %84 = vmatprep.subr.bf16.mxu0 0
    %85 = vmatpush1.bf16.msra.mxu0 0
    %86 = vmatprep.subr.bf16.mxu0 0
    %87 = vmatpush1.bf16.msra.mxu0 0
    %88 = vmatprep.subr.bf16.mxu0 0
    %89 = vmatpush1.bf16.msra.mxu0 0
    %90 = vmatprep.subr.bf16.mxu0 0
    %91 = vmatpush1.bf16.msra.mxu0 0
    %92 = vmatprep.subr.bf16.mxu0 0
    %93 = vmatpush1.bf16.msra.mxu0 0
    %94 = vmatprep.subr.bf16.mxu0 0
    %95 = vmatpush1.bf16.msra.mxu0 0
    %96 = vmatprep.subr.bf16.mxu0 0
    %97 = vmatpush1.bf16.msra.mxu0 0
    %98 = vmatprep.mubr.bf16.mxu0 0
    %99 = vmatmul.mubr.bf16.gmra.mrb[0].mxu0 %v64
    %v100 = vpop.f32.mrb[0].mxu0
    %v101 = vadd.f32 %v31, %v100
    %v102 = vpop.f32.mrb[0].mxu0
    %v103 = vpop.f32.mrb[0].mxu0
    %v104 = vadd.f32 %v31, %v103
    %v105 = vpop.f32.mrb[0].mxu0
    %106 = vdwg.mxu0
    %v107 = vmax.f32 %v101, 0.0
    %v108 = vmax.f32 %v104, 0.0
    %111 = vrot.lane.b32.xlu0 %v107, 96
    %v112 = vpop.permute.xlu0 %111
    %113 = vrot.lane.b32.xlu0 %v108, 96
    %v114 = vpop.permute.xlu0 %113
    %v117 = vadd.f32 %v107, %v112
    %v118 = vadd.f32 %v108, %v114
    %v119 = vpack.c.bf16 %v118, %v117
    %v121 = vunpack.c.l.b16 %v119
    %v122 = vunpack.c.h.b16 %v119
    %v123 = vpack.c.b16 %v121, %v121
    %v124 = vpack.c.b16 %v122, %v122
    %vm127 = vcmask 257024
    %128 = vst.msk [vmem:[#allocation2] sm:$0xf] %vm127, %v123
    %129 = vst.msk [vmem:[#allocation2 + $0x4] sm:$0xf] %vm127, %v124
    // Predicated region
    $region14: #{node_forward.1} parent=1 // pred_check
      _
    $region15: #{node_forward.1} parent=1 // pred_check_branch
      %131 = sbr.rel (0) target = $region17
    $region16: #{node_forward.1} parent=1 // pred_region
      %s133 = ssub.s32 128, 128
      %134 = vsyncadd [#allocation3], %s133
      %s135 = sshll.u32 [#allocation2], 4
      %s136 = int_to_ptr.vmem [resolvable:$true] %s135
      %141 = dma.vmem_to_hbm [thread:$0]  %s136, 128, %s3, [#allocation3], 64, 64, 4
    $region17: #{node_forward.1} parent=1 // pred_fallthru
      _
    // Predicated region
    $region18: #{node_forward.1} parent=1 // pred_check
      _
    $region19: #{node_forward.1} parent=1 // pred_check_branch
      %143 = sbr.rel (0) target = $region21
    $region20: #{node_forward.1} parent=1 // pred_region
      %144 = dma.done [#allocation3], 128
    $region21: #{node_forward.1} parent=1 // pred_fallthru
      _
    %145 = vsyncpa [#allocation3], 1

</llo_original>
